<compile_context>
chip_gen: v5e
topology: v5e:2x2
jax: 0.10.0
libtpu: 0.0.40
codegen_flags: <defaults>
</compile_context>

<pallas_src>
import numpy as np

import jax
import jax.numpy as jnp
from jax.experimental import pallas as pl
from jax.experimental.pallas import tpu as pltpu


def _round_up(x, m):
    return (x + m - 1) // m * m


def _fused_kernel(x_ref, w_ref, b_ref, o_ref):
    # out = x @ W_eff + b   (LoRA already folded into W_eff in the wrapper)
    acc = jnp.dot(x_ref[...], w_ref[...], preferred_element_type=jnp.float32)
    o_ref[...] = (acc + b_ref[...]).astype(o_ref.dtype)


def _split_kernel(x_ref, wp_ref, b_ref, wa_ref, wb_ref, o_ref):
    # out = x @ Wp + b + (x @ Wa) @ Wb   (rank dim padded to 128 lanes)
    x = x_ref[...]                                                    # (tm, Cp)
    acc = jnp.dot(x, wp_ref[...], preferred_element_type=jnp.float32)  # (tm, tn)
    a = jnp.dot(x, wa_ref[...], preferred_element_type=jnp.float32)    # (tm, rp)
    acc = acc + jnp.dot(a.astype(x.dtype), wb_ref[...],
                        preferred_element_type=jnp.float32)            # (tm, tn)
    o_ref[...] = (acc + b_ref[...]).astype(o_ref.dtype)


def lora_qkv_proj(x, w_proj, b_proj, w_a, w_b, *,
                  tm=256, tn=512,
                  compute_dtype=jnp.bfloat16,
                  fold_lora=True):
    """LoRA qkv projection: proj(x) + w_b(w_a(x)).

    x: [B, N, C]; w_proj: [C, C] (PyTorch (out,in)); b_proj: [C];
    w_a: [r, C]; w_b: [C, r].  Returns [B, N, C] in x.dtype.
    """
    B, N, C = x.shape
    r = w_a.shape[0]
    M = B * N
    out_dtype = x.dtype
    f32 = jnp.float32

    # ---- tile / padding geometry -------------------------------------------
    lane = 128
    sub = 8 * (4 // np.dtype(compute_dtype).itemsize)   # 8 rows f32 / 16 bf16
    Cp = _round_up(C, lane)                             # lane-dense channels

    # output-column tile: a multiple of 128 that divides Cp (caps the resident
    # weight at Cp*tn for large C / tight-VMEM v7x).
    tn = min(_round_up(tn, lane), Cp)
    while Cp % tn != 0:
        tn -= lane

    # row tile: big (amortize ~600-cycle grid-step cost, fill the MXU), but no
    # larger than M and leaving >= 2 row tiles when M allows (v7x megacore).
    tm_cap = _round_up(M, sub)
    if M >= 2 * sub:
        tm_cap = min(tm_cap, _round_up(pl.cdiv(M, 2), sub))
    tm = max(sub, min(_round_up(tm, sub), tm_cap))
    Mp = _round_up(M, tm)

    grid = (Mp // tm, Cp // tn)

    # ---- operands: pre-transpose to (in, out), pad, cast to compute dtype ---
    x2 = x.reshape(M, C).astype(compute_dtype)
    x2 = jnp.pad(x2, ((0, Mp - M), (0, Cp - C)))
    b2 = jnp.pad(b_proj.astype(f32), (0, Cp - C)).reshape(1, Cp)   # bias in f32

    if fold_lora:
        # y = x @ (Wp^T + Wa^T @ Wb^T) + b  -- merge LoRA into the base weight.
        w_eff = (w_proj.T.astype(f32)
                 + w_a.T.astype(f32) @ w_b.T.astype(f32))          # (C, C)
        w_eff = jnp.pad(w_eff, ((0, Cp - C), (0, Cp - C))).astype(compute_dtype)
        operands = (x2, w_eff, b2)
        kernel = _fused_kernel
        rp = None
    else:
        rp = _round_up(r, lane)
        wp_t = jnp.pad(w_proj.T, ((0, Cp - C), (0, Cp - C))).astype(compute_dtype)
        wa_t = jnp.pad(w_a.T, ((0, Cp - C), (0, rp - r))).astype(compute_dtype)
        wb_t = jnp.pad(w_b.T, ((0, rp - r), (0, Cp - C))).astype(compute_dtype)
        operands = (x2, wp_t, b2, wa_t, wb_t)
        kernel = _split_kernel

    # Weight/bias blocks are grid-constant when there is a single column tile;
    # single-buffer them (halves their VMEM cost, they are DMA'd only once).
    weights_const = (grid[1] == 1)

    def _run(single_buffer_weights, raise_vmem_limit):
        wkw = ({"pipeline_mode": pl.Buffered(1)}
               if single_buffer_weights else {})
        if fold_lora:
            in_specs = [
                pl.BlockSpec((tm, Cp), lambda i, j: (i, 0)),           # x rows
                pl.BlockSpec((Cp, tn), lambda i, j: (0, j), **wkw),    # W_eff
                pl.BlockSpec((1, tn), lambda i, j: (0, j), **wkw),     # bias
            ]
        else:
            in_specs = [
                pl.BlockSpec((tm, Cp), lambda i, j: (i, 0)),           # x rows
                pl.BlockSpec((Cp, tn), lambda i, j: (0, j), **wkw),    # Wp
                pl.BlockSpec((1, tn), lambda i, j: (0, j), **wkw),     # bias
                pl.BlockSpec((Cp, rp), lambda i, j: (0, 0), **wkw),    # Wa
                pl.BlockSpec((rp, tn), lambda i, j: (0, j), **wkw),    # Wb
            ]
        cp_kwargs = dict(dimension_semantics=("parallel", "parallel"))
        if raise_vmem_limit:
            cp_kwargs["vmem_limit_bytes"] = 64 << 20
        out = pl.pallas_call(
            kernel,
            out_shape=jax.ShapeDtypeStruct((Mp, Cp), out_dtype),
            grid_spec=pltpu.PrefetchScalarGridSpec(
                num_scalar_prefetch=0,
                grid=grid,
                in_specs=in_specs,
                out_specs=pl.BlockSpec((tm, tn), lambda i, j: (i, j)),
            ),
            compiler_params=pltpu.CompilerParams(**cp_kwargs),
        )(*operands)
        return jax.block_until_ready(out)

    try:
        out = _run(weights_const, True)
    except Exception:
        # Buffered(1) / vmem_limit knobs unsupported -> conservative defaults.
        out = _run(False, False)

    return out[:M, :C].reshape(B, N, C)


def lora_qkv_proj_ref(x, w_proj, b_proj, w_a, w_b):
    """Pure-JAX reference matching PyTorch Linear semantics."""
    proj = jnp.einsum("bnc,oc->bno", x, w_proj) + b_proj
    lora = jnp.einsum("bnr,or->bno", jnp.einsum("bnc,rc->bnr", x, w_a), w_b)
    return proj + lora


if __name__ == "__main__":
    key = jax.random.PRNGKey(0)
    B, N, C, r = 2, 8, 32, 4   # small shapes: batch=2, seq=8, hidden=32, rank=4

    k1, k2, k3, k4, k5 = jax.random.split(key, 5)
    x = jax.random.normal(k1, (B, N, C), dtype=jnp.float32)
    # PyTorch Linear weights are (out, in)
    w_proj = jax.random.normal(k2, (C, C), dtype=jnp.float32) * 0.05
    b_proj = jax.random.normal(k3, (C,), dtype=jnp.float32) * 0.05
    w_a = jax.random.normal(k4, (r, C), dtype=jnp.float32) * 0.05
    w_b = jax.random.normal(k5, (C, r), dtype=jnp.float32) * 0.05

    ref = lora_qkv_proj_ref(x, w_proj, b_proj, w_a, w_b)

    # default fast path: folded LoRA, bf16 operands, f32 accumulation
    out = jax.block_until_ready(lora_qkv_proj(x, w_proj, b_proj, w_a, w_b))
    assert out.shape == (B, N, C)
    assert jnp.allclose(out, ref, atol=2e-2, rtol=2e-2), "folded bf16 mismatch"

    # folded path with f32 compute (exercises the f32 sublane-granule tiling)
    out_f32 = jax.block_until_ready(
        lora_qkv_proj(x, w_proj, b_proj, w_a, w_b, compute_dtype=jnp.float32))
    assert jnp.allclose(out_f32, ref, atol=2e-2, rtol=2e-2), "folded f32 mismatch"

    # unfolded path: LoRA kept as separate in-kernel MXU dots (rank padded)
    out_split = jax.block_until_ready(
        lora_qkv_proj(x, w_proj, b_proj, w_a, w_b, fold_lora=False))
    assert jnp.allclose(out_split, ref, atol=2e-2, rtol=2e-2), "split mismatch"

    print("KERNEL_OK")
</pallas_src>

<mosaic_0001>
module attributes {stable_mosaic.version = 11 : i64} {
  func.func @_fused_kernel(%arg0: i32, %arg1: i32, %arg2: memref<16x128xbf16, #tpu.memory_space<vmem>>, %arg3: memref<128x128xbf16, #tpu.memory_space<vmem>>, %arg4: memref<1x128xf32, #tpu.memory_space<vmem>>, %arg5: memref<16x128xf32, #tpu.memory_space<vmem>>) attributes {dimension_semantics = [#tpu.dimension_semantics<parallel>, #tpu.dimension_semantics<parallel>], iteration_bounds = array<i64: 1, 1>, scalar_prefetch = 0 : i64, scratch_operands = 0 : i64, tpu.core_type = #tpu.core_type<tc>, window_params = [{transform_indices = @transform_0, window_bounds = array<i64: 16, 128>}, {pipeline_mode = #tpu.pipeline_mode<synchronous>, transform_indices = @transform_1, window_bounds = array<i64: 128, 128>}, {pipeline_mode = #tpu.pipeline_mode<synchronous>, transform_indices = @transform_2, window_bounds = array<i64: 1, 128>}, {transform_indices = @transform_3, window_bounds = array<i64: 16, 128>}]} {
    %c0 = arith.constant 0 : index
    %c0_0 = arith.constant 0 : index
    %0 = vector.load %arg2[%c0, %c0_0] : memref<16x128xbf16, #tpu.memory_space<vmem>>, vector<16x128xbf16>
    %c0_1 = arith.constant 0 : index
    %c0_2 = arith.constant 0 : index
    %1 = vector.load %arg3[%c0_1, %c0_2] : memref<128x128xbf16, #tpu.memory_space<vmem>>, vector<128x128xbf16>
    %cst = arith.constant dense<0.000000e+00> : vector<16x128xf32>
    %2 = tpu.matmul %0, %1, %cst {dimension_numbers = #tpu.dot_dimension_numbers<[1], [0], [0], [1], [0, 0, 1, 1], [], []>} : vector<16x128xbf16>, vector<128x128xbf16>, vector<16x128xf32> -> vector<16x128xf32>
    %c0_3 = arith.constant 0 : index
    %c0_4 = arith.constant 0 : index
    %3 = vector.load %arg4[%c0_3, %c0_4] : memref<1x128xf32, #tpu.memory_space<vmem>>, vector<1x128xf32>
    %4 = vector.broadcast %3 : vector<1x128xf32> to vector<16x128xf32>
    %5 = arith.addf %2, %4 : vector<16x128xf32>
    %c0_5 = arith.constant 0 : index
    %c0_6 = arith.constant 0 : index
    %6 = vector.load %arg5[%c0_5, %c0_6] : memref<16x128xf32, #tpu.memory_space<vmem>>, vector<16x128xf32>
    tpu.vector_store %arg5[%c0_5, %c0_6], %5 {strides = array<i32>} : memref<16x128xf32, #tpu.memory_space<vmem>>, vector<16x128xf32>,
    return
  }
  func.func @transform_0(%arg0: i32, %arg1: i32) -> (i32, i32) {
    %c0_i32 = arith.constant 0 : i32
    %c0_i32_0 = arith.constant 0 : i32
    return %arg0, %c0_i32 : i32, i32
  }
  func.func @transform_1(%arg0: i32, %arg1: i32) -> (i32, i32) {
    %c0_i32 = arith.constant 0 : i32
    %c0_i32_0 = arith.constant 0 : i32
    return %c0_i32, %arg1 : i32, i32
  }
  func.func @transform_2(%arg0: i32, %arg1: i32) -> (i32, i32) {
    %c0_i32 = arith.constant 0 : i32
    %c0_i32_0 = arith.constant 0 : i32
    return %c0_i32, %arg1 : i32, i32
  }
  func.func @transform_3(%arg0: i32, %arg1: i32) -> (i32, i32) {
    %c0_i32 = arith.constant 0 : i32
    return %arg0, %arg1 : i32, i32
  }
}

module attributes {stable_mosaic.version = 11 : i64} {
  func.func @_fused_kernel(%arg0: i32, %arg1: i32, %arg2: memref<16x128xbf16, #tpu.memory_space<vmem>>, %arg3: memref<128x128xbf16, #tpu.memory_space<vmem>>, %arg4: memref<1x128xf32, #tpu.memory_space<vmem>>, %arg5: memref<16x128xf32, #tpu.memory_space<vmem>>) attributes {dimension_semantics = [#tpu.dimension_semantics<parallel>, #tpu.dimension_semantics<parallel>], iteration_bounds = array<i64: 1, 1>, scalar_prefetch = 0 : i64, scratch_operands = 0 : i64, tpu.core_type = #tpu.core_type<tc>, window_params = [{transform_indices = @transform_0, window_bounds = array<i64: 16, 128>}, {transform_indices = @transform_1, window_bounds = array<i64: 128, 128>}, {transform_indices = @transform_2, window_bounds = array<i64: 1, 128>}, {transform_indices = @transform_3, window_bounds = array<i64: 16, 128>}]} {
    %c0 = arith.constant 0 : index
    %c0_0 = arith.constant 0 : index
    %0 = vector.load %arg2[%c0, %c0_0] : memref<16x128xbf16, #tpu.memory_space<vmem>>, vector<16x128xbf16>
    %c0_1 = arith.constant 0 : index
    %c0_2 = arith.constant 0 : index
    %1 = vector.load %arg3[%c0_1, %c0_2] : memref<128x128xbf16, #tpu.memory_space<vmem>>, vector<128x128xbf16>
    %cst = arith.constant dense<0.000000e+00> : vector<16x128xf32>
    %2 = tpu.matmul %0, %1, %cst {dimension_numbers = #tpu.dot_dimension_numbers<[1], [0], [0], [1], [0, 0, 1, 1], [], []>} : vector<16x128xbf16>, vector<128x128xbf16>, vector<16x128xf32> -> vector<16x128xf32>
    %c0_3 = arith.constant 0 : index
    %c0_4 = arith.constant 0 : index
    %3 = vector.load %arg4[%c0_3, %c0_4] : memref<1x128xf32, #tpu.memory_space<vmem>>, vector<1x128xf32>
    %4 = vector.broadcast %3 : vector<1x128xf32> to vector<16x128xf32>
    %5 = arith.addf %2, %4 : vector<16x128xf32>
    %c0_5 = arith.constant 0 : index
    %c0_6 = arith.constant 0 : index
    %6 = vector.load %arg5[%c0_5, %c0_6] : memref<16x128xf32, #tpu.memory_space<vmem>>, vector<16x128xf32>
    tpu.vector_store %arg5[%c0_5, %c0_6], %5 {strides = array<i32>} : memref<16x128xf32, #tpu.memory_space<vmem>>, vector<16x128xf32>,
    return
  }
  func.func @transform_0(%arg0: i32, %arg1: i32) -> (i32, i32) {
    %c0_i32 = arith.constant 0 : i32
    %c0_i32_0 = arith.constant 0 : i32
    return %arg0, %c0_i32 : i32, i32
  }
  func.func @transform_1(%arg0: i32, %arg1: i32) -> (i32, i32) {
    %c0_i32 = arith.constant 0 : i32
    %c0_i32_0 = arith.constant 0 : i32
    return %c0_i32, %arg1 : i32, i32
  }
  func.func @transform_2(%arg0: i32, %arg1: i32) -> (i32, i32) {
    %c0_i32 = arith.constant 0 : i32
    %c0_i32_0 = arith.constant 0 : i32
    return %c0_i32, %arg1 : i32, i32
  }
  func.func @transform_3(%arg0: i32, %arg1: i32) -> (i32, i32) {
    %c0_i32 = arith.constant 0 : i32
    return %arg0, %arg1 : i32, i32
  }
}

</mosaic_0001>

<llo_original>
// kernel: tpu_custom_call.1
$region0: #{tpu_custom_call.1}
  #allocation0 [shape = 'u32[]', space=smem, size = 0x4, offset = 0x4, fixed_abs, tag = 'smem constant byte address 0x4 - core index']
  #allocation1 [shape = 'u32[72,128]{1,0:T(1,128)}', space=vmem, size = 0x9000, scoped, tag = 'internal scratch']
  %s0 = inlined_call_operand.hbm [shape: bf16[16,128], index: 0, kind: input, shape index: {}]
  %s1 = inlined_call_operand.hbm [shape: bf16[128,128], index: 1, kind: input, shape index: {}]
  %s2 = inlined_call_operand.vmem [shape: f32[1,128], index: 2, kind: input, shape index: {}]
  %s3 = inlined_call_operand.hbm [shape: f32[16,128], index: 3, kind: output, shape index: {}]
  %s4 = sld [smem:[#allocation0]]
  $region30: #{tpu_custom_call.1} parent=0
    _
  %s6 = ssub.s32 1, %s4
  %s7 = scalar_select 0, %s6, %s4
  $region1: #{tpu_custom_call.1} parent=0
    #allocation2 [shape = 'u8[4096]{0}', space=vmem, size = 0x1000, scoped, tag = 'input window, operand 0, single buffered']
    #allocation3 [shape = 's32[1]{0}', space=sflag, size = 0x4, scoped, tag = 'scoped memory for tpu_custom_call.1']
    #allocation4 [shape = 's32[1]{0}', space=sflag, size = 0x4, scoped, tag = 'scoped memory for tpu_custom_call.1']
    #allocation5 [shape = 'u8[32768]{0}', space=vmem, size = 0x8000, scoped, tag = 'input window, operand 1, single buffered']
    #allocation6 [shape = 's32[1]{0}', space=sflag, size = 0x4, scoped, tag = 'scoped memory for tpu_custom_call.1']
    #allocation7 [shape = 'u8[8192]{0}', space=vmem, size = 0x2000, scoped, tag = 'output window, operand 0, single buffered']
    %8 = vsyncpa [#allocation3], 0
    %9 = vsyncpa [#allocation6], 0
    %10 = vsyncpa [#allocation4], 0
    // Predicated region
    $region2: #{tpu_custom_call.1} parent=1 // pred_check
      _
    $region3: #{tpu_custom_call.1} parent=1 // pred_check_branch
      %12 = sbr.rel (0) target = $region5
    $region4: #{tpu_custom_call.1} parent=1 // pred_region
      %14 = vsyncadd [#allocation3], 0
      %s15 = sshll.u32 %s0, 4
      %s16 = int_to_ptr.hbm [resolvable:$true] %s15
      %s17 = sshll.u32 [#allocation2], 4
      %s18 = int_to_ptr.vmem [resolvable:$true] %s17
      %23 = dma.hbm_to_vmem [thread:$0]  %s16, 128, %s18, [#allocation3], 64, 64, 4
    $region5: #{tpu_custom_call.1} parent=1 // pred_fallthru
      _
    // Predicated region
    $region6: #{tpu_custom_call.1} parent=1 // pred_check
      _
    $region7: #{tpu_custom_call.1} parent=1 // pred_check_branch
      %25 = sbr.rel (0) target = $region9
    $region8: #{tpu_custom_call.1} parent=1 // pred_region
      %27 = vsyncadd [#allocation6], 0
      %s28 = sshll.u32 %s1, 4
      %s29 = int_to_ptr.hbm [resolvable:$true] %s28
      %s30 = sshll.u32 [#allocation5], 4
      %s31 = int_to_ptr.vmem [resolvable:$true] %s30
      %36 = dma.hbm_to_vmem [thread:$0]  %s29, 1024, %s31, [#allocation6], 64, 64, 4
    $region9: #{tpu_custom_call.1} parent=1 // pred_fallthru
      _
    // Predicated region
    $region10: #{tpu_custom_call.1} parent=1 // pred_check
      _
    $region11: #{tpu_custom_call.1} parent=1 // pred_check_branch
      %38 = sbr.rel (0) target = $region13
    $region12: #{tpu_custom_call.1} parent=1 // pred_region
      _
    $region13: #{tpu_custom_call.1} parent=1 // pred_fallthru
      _
    // Predicated region
    $region14: #{tpu_custom_call.1} parent=1 // pred_check
      _
    $region15: #{tpu_custom_call.1} parent=1 // pred_check_branch
      %40 = sbr.rel (0) target = $region17
    $region16: #{tpu_custom_call.1} parent=1 // pred_region
      %42 = dma.done [#allocation3], 128
    $region17: #{tpu_custom_call.1} parent=1 // pred_fallthru
      _
    // Predicated region
    $region18: #{tpu_custom_call.1} parent=1 // pred_check
      _
    $region19: #{tpu_custom_call.1} parent=1 // pred_check_branch
      %44 = sbr.rel (0) target = $region21
    $region20: #{tpu_custom_call.1} parent=1 // pred_region
      %46 = dma.done [#allocation6], 1024
    $region21: #{tpu_custom_call.1} parent=1 // pred_fallthru
      _
    %v47 = vld [vmem:[#allocation2] sm:$0xf]
    %v48 = vld [vmem:[#allocation2 + $0x4] sm:$0xf]
    %v49 = vld [vmem:[#allocation5] sm:$0xf]
    %v50 = vld [vmem:[#allocation5 + $0x4] sm:$0xf]
    %v51 = vld [vmem:[#allocation5 + $0x8] sm:$0xf]
    %v52 = vld [vmem:[#allocation5 + $0xc] sm:$0xf]
    %v53 = vld [vmem:[#allocation5 + $0x10] sm:$0xf]
    %v54 = vld [vmem:[#allocation5 + $0x14] sm:$0xf]
    %v55 = vld [vmem:[#allocation5 + $0x18] sm:$0xf]
    %v56 = vld [vmem:[#allocation5 + $0x1c] sm:$0xf]
    %v57 = vld [vmem:[#allocation5 + $0x20] sm:$0xf]
    %v58 = vld [vmem:[#allocation5 + $0x24] sm:$0xf]
    %v59 = vld [vmem:[#allocation5 + $0x28] sm:$0xf]
    %v60 = vld [vmem:[#allocation5 + $0x2c] sm:$0xf]
    %v61 = vld [vmem:[#allocation5 + $0x30] sm:$0xf]
    %v62 = vld [vmem:[#allocation5 + $0x34] sm:$0xf]
    %v63 = vld [vmem:[#allocation5 + $0x38] sm:$0xf]
    %v64 = vld [vmem:[#allocation5 + $0x3c] sm:$0xf]
    %v65 = vld [vmem:[%s2] sm:$0x1]
    %v67 = vperm.slane %v65, 0
    %v71 = vunpack.c.l.b16 %v47
    %v72 = vunpack.c.l.b16 %v48
    %v73 = vpack.c.b16 %v72, %v71
    %v91 = vunpack.c.l.b16 %v49
    %v92 = vunpack.c.l.b16 %v50
    %v93 = vunpack.c.l.b16 %v51
    %v94 = vunpack.c.l.b16 %v52
    %v95 = vunpack.c.l.b16 %v53
    %v96 = vunpack.c.l.b16 %v54
    %v97 = vunpack.c.l.b16 %v55
    %v98 = vunpack.c.l.b16 %v56
    %v99 = vunpack.c.l.b16 %v57
    %v100 = vunpack.c.l.b16 %v58
    %v101 = vunpack.c.l.b16 %v59
    %v102 = vunpack.c.l.b16 %v60
    %v103 = vunpack.c.l.b16 %v61
    %v104 = vunpack.c.l.b16 %v62
    %v105 = vunpack.c.l.b16 %v63
    %v106 = vunpack.c.l.b16 %v64
    %v107 = vpack.c.b16 %v92, %v91
    %v108 = vpack.c.b16 %v94, %v93
    %v109 = vpack.c.b16 %v96, %v95
    %v110 = vpack.c.b16 %v98, %v97
    %v111 = vpack.c.b16 %v100, %v99
    %v112 = vpack.c.b16 %v102, %v101
    %v113 = vpack.c.b16 %v104, %v103
    %v114 = vpack.c.b16 %v106, %v105
    %123 = vmatpush.bf16.msra.mxu0 %v114
    %124 = vmatpush.bf16.msra.mxu0 %v113
    %125 = vmatpush.bf16.msra.mxu0 %v112
    %126 = vmatpush.bf16.msra.mxu0 %v111
    %127 = vmatpush.bf16.msra.mxu0 %v110
    %128 = vmatpush.bf16.msra.mxu0 %v109
    %129 = vmatpush.bf16.msra.mxu0 %v108
    %130 = vmatpush.bf16.msra.mxu0 %v107
    %131 = vmatmul.bf16.gmra.mxu0 %v73
    %v132 = vpop.f32.mrf.mxu0
    %v133 = vadd.f32 %v67, %v132
    %v134 = vpop.f32.mrf.mxu0
    %v135 = vadd.f32 %v67, %v134
    %136 = vdwg.mxu0
    %137 = vst [vmem:[#allocation7] sm:$0xff] %v133
    %138 = vst [vmem:[#allocation7 + $0x8] sm:$0xff] %v135
    // Predicated region
    $region22: #{tpu_custom_call.1} parent=1 // pred_check
      _
    $region23: #{tpu_custom_call.1} parent=1 // pred_check_branch
      %140 = sbr.rel (0) target = $region25
    $region24: #{tpu_custom_call.1} parent=1 // pred_region
      %142 = vsyncadd [#allocation4], 0
      %s143 = sshll.u32 [#allocation7], 4
      %s144 = int_to_ptr.vmem [resolvable:$true] %s143
      %s145 = sshll.u32 %s3, 4
      %s146 = int_to_ptr.hbm [resolvable:$true] %s145
      %151 = dma.vmem_to_hbm [thread:$0]  %s144, 256, %s146, [#allocation4], 128, 128, 8
    $region25: #{tpu_custom_call.1} parent=1 // pred_fallthru
      _
    // Predicated region
    $region26: #{tpu_custom_call.1} parent=1 // pred_check
      _
    $region27: #{tpu_custom_call.1} parent=1 // pred_check_branch
      %153 = sbr.rel (0) target = $region29
    $region28: #{tpu_custom_call.1} parent=1 // pred_region
      %155 = dma.done [#allocation4], 256
    $region29: #{tpu_custom_call.1} parent=1 // pred_fallthru
      _
    %156 = vsyncpa [#allocation3], 1
    %157 = vsyncpa [#allocation6], 1
    %158 = vsyncpa [#allocation4], 1

// kernel: tpu_custom_call.1
$region0: #{tpu_custom_call.1}
  #allocation0 [shape = 'u32[]', space=smem, size = 0x4, offset = 0x4, fixed_abs, tag = 'smem constant byte address 0x4 - core index']
  #allocation1 [shape = 'u32[72,128]{1,0:T(1,128)}', space=vmem, size = 0x9000, scoped, tag = 'internal scratch']
  %s0 = inlined_call_operand.hbm [shape: bf16[16,128], index: 0, kind: input, shape index: {}]
  %s1 = inlined_call_operand.hbm [shape: bf16[128,128], index: 1, kind: input, shape index: {}]
  %s2 = inlined_call_operand.vmem [shape: f32[1,128], index: 2, kind: input, shape index: {}]
  %s3 = inlined_call_operand.hbm [shape: f32[16,128], index: 3, kind: output, shape index: {}]
  %s4 = sld [smem:[#allocation0]]
  $region30: #{tpu_custom_call.1} parent=0
    _
  %s6 = ssub.s32 1, %s4
  %s7 = scalar_select 0, %s6, %s4
  $region1: #{tpu_custom_call.1} parent=0
    #allocation2 [shape = 'u8[4096]{0}', space=vmem, size = 0x1000, scoped, tag = 'input window, operand 0, single buffered']
    #allocation3 [shape = 's32[1]{0}', space=sflag, size = 0x4, scoped, tag = 'scoped memory for tpu_custom_call.1']
    #allocation4 [shape = 's32[1]{0}', space=sflag, size = 0x4, scoped, tag = 'scoped memory for tpu_custom_call.1']
    #allocation5 [shape = 'u8[32768]{0}', space=vmem, size = 0x8000, scoped, tag = 'input window, operand 1, single buffered']
    #allocation6 [shape = 's32[1]{0}', space=sflag, size = 0x4, scoped, tag = 'scoped memory for tpu_custom_call.1']
    #allocation7 [shape = 'u8[8192]{0}', space=vmem, size = 0x2000, scoped, tag = 'output window, operand 0, single buffered']
    %8 = vsyncpa [#allocation3], 0
    %9 = vsyncpa [#allocation6], 0
    %10 = vsyncpa [#allocation4], 0
    // Predicated region
    $region2: #{tpu_custom_call.1} parent=1 // pred_check
      _
    $region3: #{tpu_custom_call.1} parent=1 // pred_check_branch
      %12 = sbr.rel (0) target = $region5
    $region4: #{tpu_custom_call.1} parent=1 // pred_region
      %14 = vsyncadd [#allocation3], 0
      %s15 = sshll.u32 %s0, 4
      %s16 = int_to_ptr.hbm [resolvable:$true] %s15
      %s17 = sshll.u32 [#allocation2], 4
      %s18 = int_to_ptr.vmem [resolvable:$true] %s17
      %23 = dma.hbm_to_vmem [thread:$0]  %s16, 128, %s18, [#allocation3], 64, 64, 4
    $region5: #{tpu_custom_call.1} parent=1 // pred_fallthru
      _
    // Predicated region
    $region6: #{tpu_custom_call.1} parent=1 // pred_check
      _
    $region7: #{tpu_custom_call.1} parent=1 // pred_check_branch
      %25 = sbr.rel (0) target = $region9
    $region8: #{tpu_custom_call.1} parent=1 // pred_region
      %27 = vsyncadd [#allocation6], 0
      %s28 = sshll.u32 %s1, 4
      %s29 = int_to_ptr.hbm [resolvable:$true] %s28
      %s30 = sshll.u32 [#allocation5], 4
      %s31 = int_to_ptr.vmem [resolvable:$true] %s30
      %36 = dma.hbm_to_vmem [thread:$0]  %s29, 1024, %s31, [#allocation6], 64, 64, 4
    $region9: #{tpu_custom_call.1} parent=1 // pred_fallthru
      _
    // Predicated region
    $region10: #{tpu_custom_call.1} parent=1 // pred_check
      _
    $region11: #{tpu_custom_call.1} parent=1 // pred_check_branch
      %38 = sbr.rel (0) target = $region13
    $region12: #{tpu_custom_call.1} parent=1 // pred_region
      _
    $region13: #{tpu_custom_call.1} parent=1 // pred_fallthru
      _
    // Predicated region
    $region14: #{tpu_custom_call.1} parent=1 // pred_check
      _
    $region15: #{tpu_custom_call.1} parent=1 // pred_check_branch
      %40 = sbr.rel (0) target = $region17
    $region16: #{tpu_custom_call.1} parent=1 // pred_region
      %42 = dma.done [#allocation3], 128
    $region17: #{tpu_custom_call.1} parent=1 // pred_fallthru
      _
    // Predicated region
    $region18: #{tpu_custom_call.1} parent=1 // pred_check
      _
    $region19: #{tpu_custom_call.1} parent=1 // pred_check_branch
      %44 = sbr.rel (0) target = $region21
    $region20: #{tpu_custom_call.1} parent=1 // pred_region
      %46 = dma.done [#allocation6], 1024
    $region21: #{tpu_custom_call.1} parent=1 // pred_fallthru
      _
    %v47 = vld [vmem:[#allocation2] sm:$0xf]
    %v48 = vld [vmem:[#allocation2 + $0x4] sm:$0xf]
    %v49 = vld [vmem:[#allocation5] sm:$0xf]
    %v50 = vld [vmem:[#allocation5 + $0x4] sm:$0xf]
    %v51 = vld [vmem:[#allocation5 + $0x8] sm:$0xf]
    %v52 = vld [vmem:[#allocation5 + $0xc] sm:$0xf]
    %v53 = vld [vmem:[#allocation5 + $0x10] sm:$0xf]
    %v54 = vld [vmem:[#allocation5 + $0x14] sm:$0xf]
    %v55 = vld [vmem:[#allocation5 + $0x18] sm:$0xf]
    %v56 = vld [vmem:[#allocation5 + $0x1c] sm:$0xf]
    %v57 = vld [vmem:[#allocation5 + $0x20] sm:$0xf]
    %v58 = vld [vmem:[#allocation5 + $0x24] sm:$0xf]
    %v59 = vld [vmem:[#allocation5 + $0x28] sm:$0xf]
    %v60 = vld [vmem:[#allocation5 + $0x2c] sm:$0xf]
    %v61 = vld [vmem:[#allocation5 + $0x30] sm:$0xf]
    %v62 = vld [vmem:[#allocation5 + $0x34] sm:$0xf]
    %v63 = vld [vmem:[#allocation5 + $0x38] sm:$0xf]
    %v64 = vld [vmem:[#allocation5 + $0x3c] sm:$0xf]
    %v65 = vld [vmem:[%s2] sm:$0x1]
    %v67 = vperm.slane %v65, 0
    %v71 = vunpack.c.l.b16 %v47
    %v72 = vunpack.c.l.b16 %v48
    %v73 = vpack.c.b16 %v72, %v71
    %v91 = vunpack.c.l.b16 %v49
    %v92 = vunpack.c.l.b16 %v50
    %v93 = vunpack.c.l.b16 %v51
    %v94 = vunpack.c.l.b16 %v52
    %v95 = vunpack.c.l.b16 %v53
    %v96 = vunpack.c.l.b16 %v54
    %v97 = vunpack.c.l.b16 %v55
    %v98 = vunpack.c.l.b16 %v56
    %v99 = vunpack.c.l.b16 %v57
    %v100 = vunpack.c.l.b16 %v58
    %v101 = vunpack.c.l.b16 %v59
    %v102 = vunpack.c.l.b16 %v60
    %v103 = vunpack.c.l.b16 %v61
    %v104 = vunpack.c.l.b16 %v62
    %v105 = vunpack.c.l.b16 %v63
    %v106 = vunpack.c.l.b16 %v64
    %v107 = vpack.c.b16 %v92, %v91
    %v108 = vpack.c.b16 %v94, %v93
    %v109 = vpack.c.b16 %v96, %v95
    %v110 = vpack.c.b16 %v98, %v97
    %v111 = vpack.c.b16 %v100, %v99
    %v112 = vpack.c.b16 %v102, %v101
    %v113 = vpack.c.b16 %v104, %v103
    %v114 = vpack.c.b16 %v106, %v105
    %123 = vmatpush.bf16.msra.mxu0 %v114
    %124 = vmatpush.bf16.msra.mxu0 %v113
    %125 = vmatpush.bf16.msra.mxu0 %v112
    %126 = vmatpush.bf16.msra.mxu0 %v111
    %127 = vmatpush.bf16.msra.mxu0 %v110
    %128 = vmatpush.bf16.msra.mxu0 %v109
    %129 = vmatpush.bf16.msra.mxu0 %v108
    %130 = vmatpush.bf16.msra.mxu0 %v107
    %131 = vmatmul.bf16.gmra.mxu0 %v73
    %v132 = vpop.f32.mrf.mxu0
    %v133 = vadd.f32 %v67, %v132
    %v134 = vpop.f32.mrf.mxu0
    %v135 = vadd.f32 %v67, %v134
    %136 = vdwg.mxu0
    %137 = vst [vmem:[#allocation7] sm:$0xff] %v133
    %138 = vst [vmem:[#allocation7 + $0x8] sm:$0xff] %v135
    // Predicated region
    $region22: #{tpu_custom_call.1} parent=1 // pred_check
      _
    $region23: #{tpu_custom_call.1} parent=1 // pred_check_branch
      %140 = sbr.rel (0) target = $region25
    $region24: #{tpu_custom_call.1} parent=1 // pred_region
      %142 = vsyncadd [#allocation4], 0
      %s143 = sshll.u32 [#allocation7], 4
      %s144 = int_to_ptr.vmem [resolvable:$true] %s143
      %s145 = sshll.u32 %s3, 4
      %s146 = int_to_ptr.hbm [resolvable:$true] %s145
      %151 = dma.vmem_to_hbm [thread:$0]  %s144, 256, %s146, [#allocation4], 128, 128, 8
    $region25: #{tpu_custom_call.1} parent=1 // pred_fallthru
      _
    // Predicated region
    $region26: #{tpu_custom_call.1} parent=1 // pred_check
      _
    $region27: #{tpu_custom_call.1} parent=1 // pred_check_branch
      %153 = sbr.rel (0) target = $region29
    $region28: #{tpu_custom_call.1} parent=1 // pred_region
      %155 = dma.done [#allocation4], 256
    $region29: #{tpu_custom_call.1} parent=1 // pred_fallthru
      _
    %156 = vsyncpa [#allocation3], 1
    %157 = vsyncpa [#allocation6], 1
    %158 = vsyncpa [#allocation4], 1

</llo_original>
